<compile_context>
chip_gen: v5e
topology: v5e:2x2
jax: 0.10.0
libtpu: 0.0.40
codegen_flags: <defaults>
</compile_context>

<pallas_src>
import functools

import jax
import jax.numpy as jnp
from jax.experimental import pallas as pl
from jax.experimental.pallas import tpu as pltpu


# ----------------------------- Pallas kernel -----------------------------

def _conv_matmul_kernel(patches_ref, w_ref, b_ref, o_ref):
    # patches_ref: (TM, K) compute dtype (streamed M tiles)
    # w_ref:       (Cout, K) compute dtype (constant index_map -> VMEM resident)
    # b_ref:       (Cout, 1) f32           (constant index_map -> VMEM resident)
    # o_ref:       (Cout, TM) f32          (transposed output: Cout on sublane, M on lane)
    acc = jax.lax.dot_general(
        w_ref[...], patches_ref[...],
        dimension_numbers=(((1,), (1,)), ((), ())),   # contract K of both -> (Cout, TM)
        preferred_element_type=jnp.float32,           # f32 accumulation on the MXU
    )
    o_ref[...] = (acc + b_ref[...]).astype(o_ref.dtype)


def _pick_tm(M, tm=1024):
    """Pick the M tile (lane dim of the transposed output).

    Small M -> single full block (block dims == array dims, always legal).
    Large M -> largest multiple of 128 <= min(tm, M/2) that divides M (no dead work
    in the last block, >= 2 tiles so both v7x TensorCores get work); otherwise fall
    back to that cap with a ragged (masked) last block."""
    if M <= 256:
        return M
    half = max(128, ((M + 1) // 2) // 128 * 128)
    cap = min(tm, half)
    for cand in range(cap, 127, -128):
        if M % cand == 0:
            return cand
    return cap


def conv_matmul(patches, w_mat, bias, *, tm=1024, compute_dtype=jnp.bfloat16):
    """patches: (M, K), w_mat: (Cout, K), bias: (Cout,) -> (Cout, M) f32."""
    M, K = patches.shape
    Cout, Kw = w_mat.shape
    assert Kw == K

    TM = _pick_tm(M, tm)
    grid = (pl.cdiv(M, TM),)

    # bf16 (default) halves the dominant HBM stream; cast fuses into the im2col
    # fusion under jit so it costs no extra pass.  Bias add stays f32.
    patches_c = patches.astype(compute_dtype)
    w_c = w_mat.astype(compute_dtype)
    b2 = bias.reshape(Cout, 1).astype(jnp.float32)

    out = pl.pallas_call(
        _conv_matmul_kernel,
        out_shape=jax.ShapeDtypeStruct((Cout, M), jnp.float32),
        grid=grid,
        in_specs=[
            # Streamed M tiles of patches (double-buffered by the pipeline).
            # Last block dim == true K (== full array dim), no HBM K padding.
            pl.BlockSpec((TM, K), lambda i: (i, 0)),
            # Weight / bias: constant index_map -> fetched once, VMEM-resident.
            pl.BlockSpec((Cout, K), lambda i: (0, 0)),
            pl.BlockSpec((Cout, 1), lambda i: (0, 0)),
        ],
        # Transposed output block (Cout, TM): only the real channels are written.
        out_specs=pl.BlockSpec((Cout, TM), lambda i: (0, i)),
        compiler_params=pltpu.CompilerParams(
            # Independent M tiles -> shard across v7x's 2 TensorCores (neutral on
            # v5e/v6e, which have a single TC).
            dimension_semantics=("parallel",),
            # Matches the v7x scoped default; plenty of headroom everywhere
            # (per-step footprint is well under 1 MiB even at TM=2048).
            vmem_limit_bytes=32 << 20,
        ),
    )(patches_c, w_c, b2)
    return out  # (Cout, M) f32


# ----------------------------- glue (im2col, params) -----------------------------

def im2col_nchw(x, kh, kw, stride):
    """x: (B, C, H, W) -> (B*Ho*Wo, C*kh*kw), valid padding.

    K ordering is (C slowest, then kh, then kw), matching
    PyTorch weight.reshape(Cout, Cin*kh*kw).  Under jit the transpose, the kh*kw
    strided slices, the stack/reshape and the downstream dtype cast fuse into a
    single HBM pass producing the patches array."""
    B, C, H, W = x.shape
    Ho = (H - kh) // stride + 1
    Wo = (W - kw) // stride + 1
    x_nhwc = jnp.transpose(x, (0, 2, 3, 1))  # (B, H, W, C)
    cols = []
    for di in range(kh):
        for dj in range(kw):
            cols.append(
                x_nhwc[:, di:di + stride * Ho:stride, dj:dj + stride * Wo:stride, :]
            )  # (B, Ho, Wo, C)
    cols = jnp.stack(cols, axis=-1)  # (B, Ho, Wo, C, kh*kw); last idx = di*kw + dj
    return cols.reshape(B * Ho * Wo, C * kh * kw), Ho, Wo


def init_params(key, in_channels, out_channels, kernel_size):
    kw_key, kb_key = jax.random.split(key)
    fan_in = in_channels * kernel_size * kernel_size
    # kaiming_normal_ (fan_in, a=0): std = sqrt(2 / fan_in)
    std = (2.0 / fan_in) ** 0.5
    weight = std * jax.random.normal(
        kw_key, (out_channels, in_channels, kernel_size, kernel_size), dtype=jnp.float32
    )
    # PyTorch default Conv2d bias: U(-1/sqrt(fan_in), 1/sqrt(fan_in))
    bound = 1.0 / (fan_in ** 0.5)
    bias = jax.random.uniform(
        kb_key, (out_channels,), minval=-bound, maxval=bound, dtype=jnp.float32
    )
    return weight, bias


def encoder_mobile_part_forward(x, weight, bias, stride=4,
                                compute_dtype=jnp.bfloat16, tm=1024):
    """x: (B, Cin, H, W) NCHW; weight: (Cout, Cin, kh, kw); bias: (Cout,).
    Returns (B, Cout, Ho, Wo) NCHW f32, matching nn.Conv2d(..., stride=4)."""
    B = x.shape[0]
    Cout, Cin, kh, kw = weight.shape
    patches, Ho, Wo = im2col_nchw(x, kh, kw, stride)            # (M, K)
    w_mat = weight.reshape(Cout, Cin * kh * kw)                 # (Cout, K), same K order
    out_t = conv_matmul(patches, w_mat, bias,
                        tm=tm, compute_dtype=compute_dtype)     # (Cout, M)
    out = out_t.reshape(Cout, B, Ho, Wo)
    # Back to NCHW to match the PyTorch module's output layout (this pass is only
    # 8/(Cin*kh*kw) the size of the input stream; NHWC consumers could skip it).
    return jnp.transpose(out, (1, 0, 2, 3))


# ----------------------------- main -----------------------------

if __name__ == "__main__":
    key = jax.random.PRNGKey(0)
    xk, pk = jax.random.split(key)

    # Small shapes consistent with the module: B=2, Cin=4, H=W=16, Cout=8, k=3, stride=4.
    B, Cin, H, W = 2, 4, 16, 16
    Cout, ksize, stride = 8, 3, 4

    x = jax.random.normal(xk, (B, Cin, H, W), dtype=jnp.float32)
    weight, bias = init_params(pk, Cin, Cout, ksize)

    fwd_bf16 = jax.jit(functools.partial(
        encoder_mobile_part_forward, stride=stride, compute_dtype=jnp.bfloat16))
    fwd_f32 = jax.jit(functools.partial(
        encoder_mobile_part_forward, stride=stride, compute_dtype=jnp.float32))

    out = jax.block_until_ready(fwd_bf16(x, weight, bias))       # perf-default path
    out_f32 = jax.block_until_ready(fwd_f32(x, weight, bias))    # exact-check path

    # Reference: XLA's conv (same NCHW semantics as nn.Conv2d) + bias.
    ref = jax.lax.conv_general_dilated(
        x, weight, window_strides=(stride, stride), padding="VALID",
        dimension_numbers=("NCHW", "OIHW", "NCHW"),
    ) + bias.reshape(1, Cout, 1, 1)

    Ho = (H - ksize) // stride + 1
    assert out.shape == (B, Cout, Ho, Ho)
    assert out_f32.shape == (B, Cout, Ho, Ho)
    # f32 kernel path must match tightly; bf16 path (f32 accumulation) loosely.
    assert jnp.allclose(out_f32, ref, atol=1e-4, rtol=1e-4)
    assert jnp.allclose(out, ref, atol=5e-2, rtol=5e-2)

    print("KERNEL_OK")
</pallas_src>

<mosaic_0001>
module attributes {stable_mosaic.version = 11 : i64} {
  func.func @_conv_matmul_kernel(%arg0: i32, %arg1: memref<32x36xbf16, #tpu.memory_space<vmem>>, %arg2: memref<8x36xbf16, #tpu.memory_space<vmem>>, %arg3: memref<8x1xf32, #tpu.memory_space<vmem>>, %arg4: memref<8x32xf32, #tpu.memory_space<vmem>>) attributes {dimension_semantics = [#tpu.dimension_semantics<parallel>], iteration_bounds = array<i64: 1>, scalar_prefetch = 0 : i64, scratch_operands = 0 : i64, tpu.core_type = #tpu.core_type<tc>, window_params = [{transform_indices = @transform_0, window_bounds = array<i64: 32, 36>}, {pipeline_mode = #tpu.pipeline_mode<synchronous>, transform_indices = @transform_1, window_bounds = array<i64: 8, 36>}, {pipeline_mode = #tpu.pipeline_mode<synchronous>, transform_indices = @transform_2, window_bounds = array<i64: 8, 1>}, {transform_indices = @transform_3, window_bounds = array<i64: 8, 32>}]} {
    %c0 = arith.constant 0 : index
    %c0_0 = arith.constant 0 : index
    %0 = vector.load %arg2[%c0, %c0_0] : memref<8x36xbf16, #tpu.memory_space<vmem>>, vector<8x36xbf16>
    %c0_1 = arith.constant 0 : index
    %c0_2 = arith.constant 0 : index
    %1 = vector.load %arg1[%c0_1, %c0_2] : memref<32x36xbf16, #tpu.memory_space<vmem>>, vector<32x36xbf16>
    %cst = arith.constant dense<0.000000e+00> : vector<8x32xf32>
    %2 = tpu.matmul %0, %1, %cst {dimension_numbers = #tpu.dot_dimension_numbers<[1], [1], [0], [0], [0, 0, 1, 0], [], []>} : vector<8x36xbf16>, vector<32x36xbf16>, vector<8x32xf32> -> vector<8x32xf32>
    %c0_3 = arith.constant 0 : index
    %c0_4 = arith.constant 0 : index
    %3 = vector.load %arg3[%c0_3, %c0_4] : memref<8x1xf32, #tpu.memory_space<vmem>>, vector<8x1xf32>
    %4 = vector.broadcast %3 : vector<8x1xf32> to vector<8x32xf32>
    %5 = arith.addf %2, %4 : vector<8x32xf32>
    %c0_5 = arith.constant 0 : index
    %c0_6 = arith.constant 0 : index
    %6 = vector.load %arg4[%c0_5, %c0_6] : memref<8x32xf32, #tpu.memory_space<vmem>>, vector<8x32xf32>
    tpu.vector_store %arg4[%c0_5, %c0_6], %5 {strides = array<i32>} : memref<8x32xf32, #tpu.memory_space<vmem>>, vector<8x32xf32>,
    return
  }
  func.func @transform_0(%arg0: i32) -> (i32, i32) {
    %c0_i32 = arith.constant 0 : i32
    %c0_i32_0 = arith.constant 0 : i32
    return %arg0, %c0_i32 : i32, i32
  }
  func.func @transform_1(%arg0: i32) -> (i32, i32) {
    %c0_i32 = arith.constant 0 : i32
    %c0_i32_0 = arith.constant 0 : i32
    %c0_i32_1 = arith.constant 0 : i32
    return %c0_i32, %c0_i32_0 : i32, i32
  }
  func.func @transform_2(%arg0: i32) -> (i32, i32) {
    %c0_i32 = arith.constant 0 : i32
    %c0_i32_0 = arith.constant 0 : i32
    %c0_i32_1 = arith.constant 0 : i32
    return %c0_i32, %c0_i32_0 : i32, i32
  }
  func.func @transform_3(%arg0: i32) -> (i32, i32) {
    %c0_i32 = arith.constant 0 : i32
    %c0_i32_0 = arith.constant 0 : i32
    return %c0_i32, %arg0 : i32, i32
  }
}

</mosaic_0001>

<llo_original>
// kernel: encoder_mobile_part_forward.1
$region0: #{encoder_mobile_part_forward.1}
  #allocation0 [shape = 'u32[]', space=smem, size = 0x4, offset = 0x4, fixed_abs, tag = 'smem constant byte address 0x4 - core index']
  #allocation1 [shape = 'u32[72,128]{1,0:T(1,128)}', space=vmem, size = 0x9000, scoped, tag = 'internal scratch']
  %s0 = inlined_call_operand.vmem [shape: bf16[32,36], index: 0, kind: input, shape index: {}]
  %s1 = inlined_call_operand.vmem [shape: bf16[8,36], index: 1, kind: input, shape index: {}]
  %s2 = inlined_call_operand.vmem [shape: f32[8,1], index: 2, kind: input, shape index: {}]
  %s3 = inlined_call_operand.vmem [shape: f32[8,32], index: 3, kind: output, shape index: {}]
  %s4 = sld [smem:[#allocation0]]
  $region22: #{encoder_mobile_part_forward.1} parent=0
    _
  %s6 = ssub.s32 1, %s4
  %s7 = scalar_select 0, %s6, %s4
  // Predicated region
  $region2: #{encoder_mobile_part_forward.1} parent=0 // pred_check
    _
  $region3: #{encoder_mobile_part_forward.1} parent=0 // pred_check_branch
    %9 = sbr.rel (0) target = $region5
  $region4: #{encoder_mobile_part_forward.1} parent=0 // pred_region
    _
  $region5: #{encoder_mobile_part_forward.1} parent=0 // pred_fallthru
    _
  // Predicated region
  $region6: #{encoder_mobile_part_forward.1} parent=0 // pred_check
    _
  $region7: #{encoder_mobile_part_forward.1} parent=0 // pred_check_branch
    %11 = sbr.rel (0) target = $region9
  $region8: #{encoder_mobile_part_forward.1} parent=0 // pred_region
    _
  $region9: #{encoder_mobile_part_forward.1} parent=0 // pred_fallthru
    _
  // Predicated region
  $region10: #{encoder_mobile_part_forward.1} parent=0 // pred_check
    _
  $region11: #{encoder_mobile_part_forward.1} parent=0 // pred_check_branch
    %13 = sbr.rel (0) target = $region13
  $region12: #{encoder_mobile_part_forward.1} parent=0 // pred_region
    _
  $region13: #{encoder_mobile_part_forward.1} parent=0 // pred_fallthru
    _
  %v15 = vld [vmem:[%s1] sm:$0xf]
  %v16 = vld [vmem:[%s0] sm:$0xf]
  %v17 = vld [vmem:[%s0 + $0x4] sm:$0xf]
  %v18 = vld [vmem:[%s0 + $0x8] sm:$0xf]
  %v19 = vld [vmem:[%s0 + $0xc] sm:$0xf]
  %v20 = vld [vmem:[%s2] sm:$0xff]
  %22 = vset.pattern.permute.xlu0 0
  %23 = vperm.xlu0 %22, %v20
  %v24 = vpop.permute.xlu0 %23
  %v30 = vunpack.c.l.b16 %v16
  %v31 = vunpack.c.l.b16 %v17
  %v32 = vunpack.c.l.b16 %v18
  %v33 = vunpack.c.l.b16 %v19
  %v34 = vpack.c.b16 %v31, %v30
  %v35 = vpack.c.b16 %v33, %v32
  %vm36 = vcmask 293888
  %v38 = vsel %vm36, %v15, 0
  %v41 = vsel %vm36, %v34, 0
  %v44 = vsel %vm36, %v35, 0
  %46 = vmatpush.bf16.xpose.msra.mxu0 0
  %47 = vmatpush.bf16.xpose.msra.mxu0 0
  %48 = vmatpush.bf16.xpose.msra.mxu0 0
  %49 = vmatpush.bf16.xpose.msra.mxu0 0
  %50 = vmatpush.bf16.xpose.msra.mxu0 0
  %51 = vmatpush.bf16.xpose.msra.mxu0 0
  %52 = vmatpush.bf16.xpose.msra.mxu0 %v44
  %53 = vmatpush.bf16.xpose.msra.mxu0 %v41
  %54 = vmatmul.bf16.gmra.mxu0 %v38
  %v55 = vpop.f32.mrf.mxu0
  %v56 = vadd.f32 %v24, %v55
  %v57 = vpop.f32.mrf.mxu0
  %58 = vdwg.mxu0
  %vm59 = vcmask 261120
  %60 = vst.msk [vmem:[%s3] sm:$0xff] %vm59, %v56
  // Predicated region
  $region14: #{encoder_mobile_part_forward.1} parent=0 // pred_check
    _
  $region15: #{encoder_mobile_part_forward.1} parent=0 // pred_check_branch
    %62 = sbr.rel (0) target = $region17
  $region16: #{encoder_mobile_part_forward.1} parent=0 // pred_region
    _
  $region17: #{encoder_mobile_part_forward.1} parent=0 // pred_fallthru
    _
  // Predicated region
  $region18: #{encoder_mobile_part_forward.1} parent=0 // pred_check
    _
  $region19: #{encoder_mobile_part_forward.1} parent=0 // pred_check_branch
    %64 = sbr.rel (0) target = $region21
  $region20: #{encoder_mobile_part_forward.1} parent=0 // pred_region
    _
  $region21: #{encoder_mobile_part_forward.1} parent=0 // pred_fallthru
    _

</llo_original>
